<compile_context>
chip_gen: v7x
topology: tpu7x:2x2x1
jax: 0.10.0
libtpu: 0.0.40
codegen_flags: <defaults>
</compile_context>

<pallas_src>
import functools

import jax
import jax.numpy as jnp
import numpy as np
from jax.experimental import pallas as pl
from jax.experimental.pallas import tpu as pltpu


def _round_up(x, m):
    return (x + m - 1) // m * m


def _pad_last(a, target):
    pad = target - a.shape[-1]
    if pad == 0:
        return a
    cfg = [(0, 0)] * (a.ndim - 1) + [(0, pad)]
    return jnp.pad(a, cfg)


def _patch_proj_kernel(x_ref, w_ref, pos_ref, o_ref, *, compute_dtype):
    # x_ref:   (bb, N, Pp)  patches for bb batch elements (current grid step)
    # w_ref:   (Pp, Ep)     pre-transposed linear weight (resident across grid)
    # pos_ref: (N, Ep)      positional rows 1..N with the bias folded in (f32)
    # o_ref:   (bb, N, Ep)  output tile (full, aligned, lane-dense store)
    bb, n, p = x_ref.shape
    e = w_ref.shape[1]

    if bb == 1:
        x2d = x_ref[0]                              # (N, Pp)
    else:
        x2d = x_ref[...].reshape(bb * n, p)         # merge batch into matmul M

    w = w_ref[...]
    if compute_dtype is not None:
        x2d = x2d.astype(compute_dtype)
        w = w.astype(compute_dtype)

    # Hot path: (bb*N, Pp) @ (Pp, Ep) on the MXU with f32 accumulation.
    proj = jnp.dot(x2d, w, preferred_element_type=jnp.float32)
    proj = proj.reshape(bb, n, e) + pos_ref[...]    # f32 add; pos broadcasts over bb
    o_ref[...] = proj.astype(o_ref.dtype)


def linear_projection(x, weight, bias, class_token, pos_embedding,
                      *, compute_dtype=None, out_dtype=None, block_batch=None):
    """Eval-mode forward of LinearProjection.

    x:             (B, N, P)   flattened patches
    weight:        (E, P)      nn.Linear weight (torch layout)
    bias:          (E,)        nn.Linear bias
    class_token:   (1, E)
    pos_embedding: (1, N+1, E)
    returns:       (B, N+1, E)
    """
    B, N, P = x.shape
    E = weight.shape[0]
    out_dtype = x.dtype if out_dtype is None else out_dtype

    # Lane-dense padding of the contraction (P) and output (E) dims.
    Pp = _round_up(P, 128)
    Ep = _round_up(E, 128)

    # One-time parameter prep (outside the hot loop):
    w_t = jnp.transpose(weight)                                        # (P, E)
    w_p = _pad_last(jnp.pad(w_t, ((0, Pp - P), (0, 0))), Ep)           # (Pp, Ep)
    pos = pos_embedding[0].astype(jnp.float32)                         # (N+1, E)
    pos_patches = _pad_last(pos[1:, :] + bias.astype(jnp.float32)[None, :], Ep)  # (N, Ep)
    x_p = _pad_last(x, Pp)                                             # (B, N, Pp)

    if compute_dtype is not None:
        x_p = x_p.astype(compute_dtype)
        w_p = w_p.astype(compute_dtype)

    # Batch tile: feed the MXU with M = bb*N rows per step, while leaving
    # >= 2 grid steps for megacore ("parallel") sharding when the batch allows.
    if block_batch is None:
        bb = max(1, min(B, max(1, 256 // max(N, 1))))
        while B % bb:
            bb -= 1
        if B // bb < 2 and B >= 2:
            bb = B // 2
            while B % bb:
                bb -= 1
        bb = max(bb, 1)
    else:
        bb = block_batch
        assert B % bb == 0, "block_batch must divide the batch size"
    grid = (B // bb,)

    in_bytes = jnp.dtype(x_p.dtype).itemsize
    out_bytes = jnp.dtype(out_dtype).itemsize
    vmem_est = (2 * bb * N * Pp * in_bytes      # x (double-buffered)
                + 2 * Pp * Ep * in_bytes        # weight
                + 2 * N * Ep * 4                # pos (f32)
                + 2 * bb * N * Ep * out_bytes)  # output
    vmem_limit = int(min(max(2 * vmem_est + (4 << 20), 16 << 20), 64 << 20))

    patches = pl.pallas_call(
        functools.partial(_patch_proj_kernel, compute_dtype=compute_dtype),
        out_shape=jax.ShapeDtypeStruct((B, N, Ep), out_dtype),
        grid=grid,
        in_specs=[
            pl.BlockSpec((bb, N, Pp), lambda i: (i, 0, 0)),
            pl.BlockSpec((Pp, Ep), lambda i: (0, 0)),
            pl.BlockSpec((N, Ep), lambda i: (0, 0)),
        ],
        out_specs=pl.BlockSpec((bb, N, Ep), lambda i: (i, 0, 0)),
        compiler_params=pltpu.CompilerParams(
            dimension_semantics=("parallel",),
            vmem_limit_bytes=vmem_limit,
        ),
    )(x_p, w_p, pos_patches)

    patches = patches[:, :, :E]                                        # strip E padding

    # Class-token row (identical for every batch element): compute once, concat.
    cls_row = (class_token.astype(jnp.float32) + pos[:1, :]).astype(out_dtype)  # (1, E)
    cls = jnp.broadcast_to(cls_row[None, :, :], (B, 1, E))
    out = jnp.concatenate([cls, patches], axis=1)                      # (B, N+1, E)
    # Dropout: eval mode == identity.
    return out


if __name__ == "__main__":
    # Small shapes consistent with the module's forward.
    B = 2      # batch
    N = 8      # num_patches
    P = 64     # patch_vec_size
    E = 32     # embedded_vec_dim
    # drop_rate unused (eval-mode dropout == identity)

    key = jax.random.PRNGKey(0)
    kx, kw, kb, kc, kp = jax.random.split(key, 5)

    x = jax.random.normal(kx, (B, N, P), dtype=jnp.float32)
    weight = jax.random.normal(kw, (E, P), dtype=jnp.float32) * 0.02   # nn.Linear weight (E, P)
    bias = jax.random.normal(kb, (E,), dtype=jnp.float32) * 0.02       # nn.Linear bias (E,)
    class_token = jax.random.normal(kc, (1, E), dtype=jnp.float32)
    pos_embedding = jax.random.normal(kp, (1, N + 1, E), dtype=jnp.float32)

    # Plain-JAX reference of the intended forward pass.
    proj_ref = jnp.einsum("bnp,ep->bne", x, weight) + bias             # (B, N, E)
    ct_ref = jnp.broadcast_to(class_token[None, :, :], (B, 1, E))      # (B, 1, E)
    ref = jnp.concatenate([ct_ref, proj_ref], axis=1) + pos_embedding  # (B, N+1, E)

    # 1) f32 path (default tiling): exact vs reference.
    out = jax.block_until_ready(
        linear_projection(x, weight, bias, class_token, pos_embedding))
    np.testing.assert_allclose(np.asarray(out), np.asarray(ref), rtol=1e-5, atol=1e-5)

    # 2) Exercise the multi-batch-per-tile (flattened-M) path explicitly.
    out2 = jax.block_until_ready(
        linear_projection(x, weight, bias, class_token, pos_embedding, block_batch=2))
    np.testing.assert_allclose(np.asarray(out2), np.asarray(ref), rtol=1e-5, atol=1e-5)

    # 3) bf16-MXU path (f32 accumulation), looser tolerance.
    out_bf16 = jax.block_until_ready(
        linear_projection(x, weight, bias, class_token, pos_embedding,
                          compute_dtype=jnp.bfloat16))
    np.testing.assert_allclose(np.asarray(out_bf16), np.asarray(ref), rtol=5e-2, atol=5e-2)

    print("KERNEL_OK")
</pallas_src>

<mosaic_0001>
module attributes {stable_mosaic.version = 11 : i64} {
  func.func @_patch_proj_kernel(%arg0: i32, %arg1: memref<1x8x128xf32, #tpu.memory_space<vmem>>, %arg2: memref<128x128xf32, #tpu.memory_space<vmem>>, %arg3: memref<8x128xf32, #tpu.memory_space<vmem>>, %arg4: memref<1x8x128xf32, #tpu.memory_space<vmem>>) attributes {dimension_semantics = [#tpu.dimension_semantics<parallel>], iteration_bounds = array<i64: 2>, scalar_prefetch = 0 : i64, scratch_operands = 0 : i64, tpu.core_type = #tpu.core_type<tc>, window_params = [{transform_indices = @transform_0, window_bounds = array<i64: 1, 8, 128>}, {pipeline_mode = #tpu.pipeline_mode<synchronous>, transform_indices = @transform_1, window_bounds = array<i64: 128, 128>}, {pipeline_mode = #tpu.pipeline_mode<synchronous>, transform_indices = @transform_2, window_bounds = array<i64: 8, 128>}, {transform_indices = @transform_3, window_bounds = array<i64: 1, 8, 128>}]} {
    %c0 = arith.constant 0 : index
    %c0_0 = arith.constant 0 : index
    %c0_1 = arith.constant 0 : index
    %0 = vector.load %arg1[%c0, %c0_0, %c0_1] : memref<1x8x128xf32, #tpu.memory_space<vmem>>, vector<1x8x128xf32>
    %1 = vector.shape_cast %0 : vector<1x8x128xf32> to vector<8x128xf32>
    %c0_2 = arith.constant 0 : index
    %c0_3 = arith.constant 0 : index
    %2 = vector.load %arg2[%c0_2, %c0_3] : memref<128x128xf32, #tpu.memory_space<vmem>>, vector<128x128xf32>
    %cst = arith.constant dense<0.000000e+00> : vector<8x128xf32>
    %3 = tpu.matmul %1, %2, %cst {dimension_numbers = #tpu.dot_dimension_numbers<[1], [0], [0], [1], [0, 0, 1, 1], [], []>} : vector<8x128xf32>, vector<128x128xf32>, vector<8x128xf32> -> vector<8x128xf32>
    %4 = vector.shape_cast %3 : vector<8x128xf32> to vector<1x8x128xf32>
    %c0_4 = arith.constant 0 : index
    %c0_5 = arith.constant 0 : index
    %5 = vector.load %arg3[%c0_4, %c0_5] : memref<8x128xf32, #tpu.memory_space<vmem>>, vector<8x128xf32>
    %6 = vector.shape_cast %5 : vector<8x128xf32> to vector<1x8x128xf32>
    %7 = arith.addf %4, %6 : vector<1x8x128xf32>
    %c0_6 = arith.constant 0 : index
    %c0_7 = arith.constant 0 : index
    %c0_8 = arith.constant 0 : index
    %8 = vector.load %arg4[%c0_6, %c0_7, %c0_8] : memref<1x8x128xf32, #tpu.memory_space<vmem>>, vector<1x8x128xf32>
    tpu.vector_store %arg4[%c0_6, %c0_7, %c0_8], %7 {strides = array<i32>} : memref<1x8x128xf32, #tpu.memory_space<vmem>>, vector<1x8x128xf32>,
    return
  }
  func.func @transform_0(%arg0: i32) -> (i32, i32, i32) {
    %c0_i32 = arith.constant 0 : i32
    %c0_i32_0 = arith.constant 0 : i32
    %c0_i32_1 = arith.constant 0 : i32
    return %arg0, %c0_i32, %c0_i32_0 : i32, i32, i32
  }
  func.func @transform_1(%arg0: i32) -> (i32, i32) {
    %c0_i32 = arith.constant 0 : i32
    %c0_i32_0 = arith.constant 0 : i32
    %c0_i32_1 = arith.constant 0 : i32
    return %c0_i32, %c0_i32_0 : i32, i32
  }
  func.func @transform_2(%arg0: i32) -> (i32, i32) {
    %c0_i32 = arith.constant 0 : i32
    %c0_i32_0 = arith.constant 0 : i32
    %c0_i32_1 = arith.constant 0 : i32
    return %c0_i32, %c0_i32_0 : i32, i32
  }
  func.func @transform_3(%arg0: i32) -> (i32, i32, i32) {
    %c0_i32 = arith.constant 0 : i32
    %c0_i32_0 = arith.constant 0 : i32
    %c0_i32_1 = arith.constant 0 : i32
    return %arg0, %c0_i32, %c0_i32_0 : i32, i32, i32
  }
}

</mosaic_0001>

<llo_original>
// kernel: tpu_custom_call.1
$region0: #{tpu_custom_call.1}
  #allocation0 [shape = 'u32[]', space=smem, size = 0x4, offset = 0x4, fixed_abs, tag = 'smem constant byte address 0x4 - core index']
  #allocation1 [shape = 'u32[144,128]{1,0:T(1,128)}', space=vmem, size = 0x12000, scoped, tag = 'internal scratch']
  %s0 = inlined_call_operand.hbm [shape: f32[2,8,128], index: 0, kind: input, shape index: {}]
  %s1 = inlined_call_operand.hbm [shape: f32[128,128], index: 1, kind: input, shape index: {}]
  %s2 = inlined_call_operand.hbm [shape: f32[8,128], index: 2, kind: input, shape index: {}]
  %s3 = inlined_call_operand.hbm [shape: f32[2,8,128], index: 3, kind: output, shape index: {}]
  %s4 = sld [smem:[#allocation0]]
  $region57: #{tpu_custom_call.1} parent=0
    _
  %s6 = ssub.s32 1, %s4
  %s7 = scalar_select 0, %s6, %s4
  $region1: #{tpu_custom_call.1} parent=0
    #allocation2 [shape = 'u8[8192]{0}', space=vmem, size = 0x2000, scoped, tag = 'input window, operand 0']
    #allocation3 [shape = 's32[2]{0}', space=sflag, size = 0x8, scoped, tag = 'scoped memory for tpu_custom_call.1']
    #allocation4 [shape = 's32[2]{0}', space=sflag, size = 0x8, scoped, tag = 'scoped memory for tpu_custom_call.1']
    #allocation5 [shape = 'u8[65536]{0}', space=vmem, size = 0x10000, scoped, tag = 'input window, operand 1, single buffered']
    #allocation6 [shape = 's32[1]{0}', space=sflag, size = 0x4, scoped, tag = 'scoped memory for tpu_custom_call.1']
    #allocation7 [shape = 'u8[4096]{0}', space=vmem, size = 0x1000, scoped, tag = 'input window, operand 2, single buffered']
    #allocation8 [shape = 'u8[8192]{0}', space=vmem, size = 0x2000, scoped, tag = 'output window, operand 0']
    %8 = vsyncpa [#allocation3], 0
    %s9 = scalar_lea.sflag [#allocation3], 1
    %10 = vsyncpa %s9, 0
    %11 = vsyncpa [#allocation6], 0
    %12 = vsyncpa [#allocation4], 0
    %s13 = scalar_lea.sflag [#allocation4], 1
    %14 = vsyncpa %s13, 0
    loop: start=0, step=1, limit=4
    $region2: #{tpu_custom_call.1} parent=1 // loop_pre_header
      _
    $region3: #{tpu_custom_call.1} parent=1 // loop_header
      %s16 = sphi 0, %s20
      %p17 = scmp.ge.s32.totalorder %s16, 4
      %s26 = sphi 0, %s28
      %s29 = sphi 0, %s26
      %s30 = sphi 0, %s29
      %s46 = sphi 0, %s30
      %s50 = sphi 0, %s50
      %s52 = sphi 0, %s50
      %s53 = sphi 0, %s52
      %s67 = sphi 0, %s53
      %s71 = sphi 0, %s71
      %s73 = sphi 0, %s71
      %s74 = sphi 0, %s73
      %s88 = sphi 0, %s74
      %s94 = sphi 0, %s96
      %s97 = sphi 0, %s94
      %s98 = sphi 0, %s97
      %s114 = sphi 0, %s98
    $region4: #{tpu_custom_call.1} parent=1 // loop_header_branch
      %19 = sbr.rel (%p17) target = $region8
    $region5: #{tpu_custom_call.1} parent=1 // loop_body
      %s21 = ssub.s32 %s16, 1
      %s22 = ssub.s32 %s16, 2
      %s23 = sadd.s32 %s16, 1
      %s24 = ssub.s32 %s16, %s23
      %p25 = scmp.eq.s32.totalorder %s24, 0
      %s27 = sadd.s32 %s26, 1
      %s28 = scalar_select %p25, %s26, %s27
      %p31 = pneg %p25
      %p32 = scmp.eq.s32.totalorder %s16, 1
      %p33 = por %p31, %p32
      %p34 = scmp.ne.s32.totalorder %s26, %s29
      %p35 = scmp.eq.s32.totalorder %s16, 0
      %p36 = por %p34, %p35
      %p37 = scmp.ne.s32.totalorder %s26, %s29
      %p38 = scmp.eq.s32.totalorder %s21, 1
      %p39 = por %p37, %p38
      %p40 = scmp.ne.s32.totalorder %s29, %s30
      %p41 = scmp.eq.s32.totalorder %s21, 0
      %p42 = por %p40, %p41
      %p43 = scmp.ne.s32.totalorder %s29, %s30
      %p44 = scmp.eq.s32.totalorder %s22, 1
      %p45 = por %p43, %p44
      %p47 = scmp.ne.s32.totalorder %s30, %s46
      %p48 = scmp.eq.s32.totalorder %s22, 0
      %p49 = por %p47, %p48
      %s51 = sadd.s32 %s50, 1
      %p54 = scmp.eq.s32.totalorder %s16, 1
      %p55 = scmp.ne.s32.totalorder %s50, %s52
      %p56 = scmp.eq.s32.totalorder %s16, 0
      %p57 = por %p55, %p56
      %p58 = scmp.ne.s32.totalorder %s50, %s52
      %p59 = scmp.eq.s32.totalorder %s21, 1
      %p60 = por %p58, %p59
      %p61 = scmp.ne.s32.totalorder %s52, %s53
      %p62 = scmp.eq.s32.totalorder %s21, 0
      %p63 = por %p61, %p62
      %p64 = scmp.ne.s32.totalorder %s52, %s53
      %p65 = scmp.eq.s32.totalorder %s22, 1
      %p66 = por %p64, %p65
      %p68 = scmp.ne.s32.totalorder %s53, %s67
      %p69 = scmp.eq.s32.totalorder %s22, 0
      %p70 = por %p68, %p69
      %s72 = sadd.s32 %s71, 1
      %p75 = scmp.eq.s32.totalorder %s16, 1
      %p76 = scmp.ne.s32.totalorder %s71, %s73
      %p77 = scmp.eq.s32.totalorder %s16, 0
      %p78 = por %p76, %p77
      %p79 = scmp.ne.s32.totalorder %s71, %s73
      %p80 = scmp.eq.s32.totalorder %s21, 1
      %p81 = por %p79, %p80
      %p82 = scmp.ne.s32.totalorder %s73, %s74
      %p83 = scmp.eq.s32.totalorder %s21, 0
      %p84 = por %p82, %p83
      %p85 = scmp.ne.s32.totalorder %s73, %s74
      %p86 = scmp.eq.s32.totalorder %s22, 1
      %p87 = por %p85, %p86
      %p89 = scmp.ne.s32.totalorder %s74, %s88
      %p90 = scmp.eq.s32.totalorder %s22, 0
      %p91 = por %p89, %p90
      %s92 = ssub.s32 %s16, %s23
      %p93 = scmp.eq.s32.totalorder %s92, 0
      %s95 = sadd.s32 %s94, 1
      %s96 = scalar_select %p93, %s94, %s95
      %p99 = pneg %p93
      %p100 = scmp.eq.s32.totalorder %s16, 1
      %p101 = por %p99, %p100
      %p102 = scmp.ne.s32.totalorder %s94, %s97
      %p103 = scmp.eq.s32.totalorder %s16, 0
      %p104 = por %p102, %p103
      %p105 = scmp.ne.s32.totalorder %s94, %s97
      %p106 = scmp.eq.s32.totalorder %s21, 1
      %p107 = por %p105, %p106
      %p108 = scmp.ne.s32.totalorder %s97, %s98
      %p109 = scmp.eq.s32.totalorder %s21, 0
      %p110 = por %p108, %p109
      %p111 = scmp.ne.s32.totalorder %s97, %s98
      %p112 = scmp.eq.s32.totalorder %s22, 1
      %p113 = por %p111, %p112
      %p115 = scmp.ne.s32.totalorder %s98, %s114
      %p116 = scmp.eq.s32.totalorder %s22, 0
      %p117 = por %p115, %p116
      %p118 = scmp.le.s32.totalorder 1, %s16
      %p119 = scmp.lt.s32.totalorder %s16, 3
      %p120 = pnand %p118, %p119
      %p121 = pneg %p120
      // Predicated region
      $region9: #{tpu_custom_call.1} parent=5 // pred_check
        _
      $region10: #{tpu_custom_call.1} parent=5 // pred_check_branch
        %123 = sbr.rel (%p120) target = $region12
      $region11: #{tpu_custom_call.1} parent=5 // pred_region
        %s124 = ssub.s32 %s16, 1
        // Predicated region
        $region13: #{tpu_custom_call.1} parent=11 // pred_check
          %p125 = pneg %p63
        $region14: #{tpu_custom_call.1} parent=11 // pred_check_branch
          %127 = sbr.rel (%p125) target = $region16
        $region15: #{tpu_custom_call.1} parent=11 // pred_region
          %s129 = ssub.s32 2048, 2048
          %130 = vsyncadd [#allocation6], %s129
          %s131 = sshll.u32 [#allocation5], 4
          %s132 = int_to_ptr.vmem [resolvable:$true] %s131
          %137 = dma.hbm_to_vmem [thread:$0]  %s1, 2048, %s132, [#allocation6], 128, 128, 8
        $region16: #{tpu_custom_call.1} parent=11 // pred_fallthru
          _
        // Predicated region
        $region17: #{tpu_custom_call.1} parent=11 // pred_check
          %p138 = pneg %p84
        $region18: #{tpu_custom_call.1} parent=11 // pred_check_branch
          %140 = sbr.rel (%p138) target = $region20
        $region19: #{tpu_custom_call.1} parent=11 // pred_region
          %s142 = ssub.s32 128, 128
          %143 = vsyncadd [#allocation6], %s142
          %s145 = sshll.u32 [#allocation7], 4
          %s146 = int_to_ptr.vmem [resolvable:$true] %s145
          %148 = dma.hbm_to_vmem [thread:$0]  %s2, 128, %s146, [#allocation6]
        $region20: #{tpu_custom_call.1} parent=11 // pred_fallthru
          _
      $region12: #{tpu_custom_call.1} parent=5 // pred_fallthru
        _
      %p149 = scmp.lt.s32.totalorder %s16, 2
      // Predicated region
      $region21: #{tpu_custom_call.1} parent=5 // pred_check
        %p150 = pneg %p149
      $region22: #{tpu_custom_call.1} parent=5 // pred_check_branch
        %152 = sbr.rel (%p150) target = $region24
      $region23: #{tpu_custom_call.1} parent=5 // pred_region
        // Predicated region
        $region25: #{tpu_custom_call.1} parent=23 // pred_check
          %p153 = pneg %p36
        $region26: #{tpu_custom_call.1} parent=23 // pred_check_branch
          %155 = sbr.rel (%p153) target = $region28
        $region27: #{tpu_custom_call.1} parent=23 // pred_region
          %s156 = sand.u32 %s26, 1
          %s157 = scalar_lea.sflag [#allocation3], %s156
          %s158 = sand.u32 %s26, 1
          %s159 = smul.addr %s158, 8
          %s160 = scalar_lea.vmem [#allocation2], %s159
          %s162 = ssub.s32 128, 128
          %163 = vsyncadd %s157, %s162
          %s164 = smul.addr %s16, 128
          %s165 = scalar_lea.hbm %s0, %s164
          %s167 = sshll.u32 %s160, 4
          %s168 = int_to_ptr.vmem [resolvable:$true] %s167
          %170 = dma.hbm_to_vmem [thread:$0]  %s165, 128, %s168, %s157
        $region28: #{tpu_custom_call.1} parent=23 // pred_fallthru
          _
      $region24: #{tpu_custom_call.1} parent=5 // pred_fallthru
        _
      %p171 = scmp.le.s32.totalorder 1, %s16
      %p172 = scmp.lt.s32.totalorder %s16, 3
      %p173 = pnand %p171, %p172
      %p174 = pneg %p173
      // Predicated region
      $region29: #{tpu_custom_call.1} parent=5 // pred_check
        _
      $region30: #{tpu_custom_call.1} parent=5 // pred_check_branch
        %176 = sbr.rel (%p173) target = $region32
      $region31: #{tpu_custom_call.1} parent=5 // pred_region
        %s177 = ssub.s32 %s16, 1
        %s178 = sand.u32 %s29, 1
        %s179 = scalar_lea.sflag [#allocation3], %s178
        %s180 = sand.u32 %s29, 1
        %s181 = smul.addr %s180, 8
        %s182 = scalar_lea.vmem [#allocation2], %s181
        // Predicated region
        $region33: #{tpu_custom_call.1} parent=31 // pred_check
          %p183 = pneg %p42
        $region34: #{tpu_custom_call.1} parent=31 // pred_check_branch
          %185 = sbr.rel (%p183) target = $region36
        $region35: #{tpu_custom_call.1} parent=31 // pred_region
          %186 = dma.done %s179, 128
        $region36: #{tpu_custom_call.1} parent=31 // pred_fallthru
          _
        // Predicated region
        $region37: #{tpu_custom_call.1} parent=31 // pred_check
          %p187 = pneg %p63
        $region38: #{tpu_custom_call.1} parent=31 // pred_check_branch
          %189 = sbr.rel (%p187) target = $region40
        $region39: #{tpu_custom_call.1} parent=31 // pred_region
          %190 = dma.done [#allocation6], 2048
        $region40: #{tpu_custom_call.1} parent=31 // pred_fallthru
          _
        // Predicated region
        $region41: #{tpu_custom_call.1} parent=31 // pred_check
          %p191 = pneg %p84
        $region42: #{tpu_custom_call.1} parent=31 // pred_check_branch
          %193 = sbr.rel (%p191) target = $region44
        $region43: #{tpu_custom_call.1} parent=31 // pred_region
          %194 = dma.done [#allocation6], 128
        $region44: #{tpu_custom_call.1} parent=31 // pred_fallthru
          _
        %s195 = sand.u32 %s29, 1
        %s196 = scalar_lea.sflag [#allocation3], %s195
        %s197 = sand.u32 %s29, 1
        %s198 = smul.addr %s197, 8
        %s199 = scalar_lea.vmem [#allocation2], %s198
        %p200 = pneg %p42
        %p201 = pneg %p39
        %p202 = pneg %p63
        %p203 = pneg %p60
        %p204 = pneg %p84
        %p205 = pneg %p81
        %p206 = pneg %p110
        %p207 = pneg %p107
        %s208 = sand.u32 %s97, 1
        %s209 = scalar_lea.sflag [#allocation4], %s208
        %s210 = sand.u32 %s97, 1
        %s211 = smul.addr %s210, 8
        %s212 = scalar_lea.vmem [#allocation8], %s211
        %v213 = vld [vmem:[%s182] sm:$0xff]
        %v214 = vld [vmem:[#allocation5] sm:$0xff]
        %v215 = vld [vmem:[#allocation5 + $0x8] sm:$0xff]
        %v216 = vld [vmem:[#allocation5 + $0x10] sm:$0xff]
        %v217 = vld [vmem:[#allocation5 + $0x18] sm:$0xff]
        %v218 = vld [vmem:[#allocation5 + $0x20] sm:$0xff]
        %v219 = vld [vmem:[#allocation5 + $0x28] sm:$0xff]
        %v220 = vld [vmem:[#allocation5 + $0x30] sm:$0xff]
        %v221 = vld [vmem:[#allocation5 + $0x38] sm:$0xff]
        %v222 = vld [vmem:[#allocation5 + $0x40] sm:$0xff]
        %v223 = vld [vmem:[#allocation5 + $0x48] sm:$0xff]
        %v224 = vld [vmem:[#allocation5 + $0x50] sm:$0xff]
        %v225 = vld [vmem:[#allocation5 + $0x58] sm:$0xff]
        %v226 = vld [vmem:[#allocation5 + $0x60] sm:$0xff]
        %v227 = vld [vmem:[#allocation5 + $0x68] sm:$0xff]
        %v228 = vld [vmem:[#allocation5 + $0x70] sm:$0xff]
        %v229 = vld [vmem:[#allocation5 + $0x78] sm:$0xff]
        %230 = vmatprep.subr.mxu0 0.0
        %231 = vmatpush1.msra.mxu0 %v214
        %232 = vmatprep.subr.mxu0 0.0
        %233 = vmatpush1.msra.mxu0 %v215
        %234 = vmatprep.subr.mxu0 0.0
        %235 = vmatpush1.msra.mxu0 %v216
        %236 = vmatprep.subr.mxu0 0.0
        %237 = vmatpush1.msra.mxu0 %v217
        %238 = vmatprep.subr.mxu0 0.0
        %239 = vmatpush1.msra.mxu0 %v218
        %240 = vmatprep.subr.mxu0 0.0
        %241 = vmatpush1.msra.mxu0 %v219
        %242 = vmatprep.subr.mxu0 0.0
        %243 = vmatpush1.msra.mxu0 %v220
        %244 = vmatprep.subr.mxu0 0.0
        %245 = vmatpush1.msra.mxu0 %v221
        %246 = vmatprep.subr.mxu0 0.0
        %247 = vmatpush1.msra.mxu0 %v222
        %248 = vmatprep.subr.mxu0 0.0
        %249 = vmatpush1.msra.mxu0 %v223
        %250 = vmatprep.subr.mxu0 0.0
        %251 = vmatpush1.msra.mxu0 %v224
        %252 = vmatprep.subr.mxu0 0.0
        %253 = vmatpush1.msra.mxu0 %v225
        %254 = vmatprep.subr.mxu0 0.0
        %255 = vmatpush1.msra.mxu0 %v226
        %256 = vmatprep.subr.mxu0 0.0
        %257 = vmatpush1.msra.mxu0 %v227
        %258 = vmatprep.subr.mxu0 0.0
        %259 = vmatpush1.msra.mxu0 %v228
        %260 = vmatprep.subr.mxu0 0.0
        %261 = vmatpush1.msra.mxu0 %v229
        %262 = vmatprep.subr.mxu0 0.0
        %263 = vmatpush1.msra.mxu0 0.0
        %264 = vmatprep.subr.mxu0 0.0
        %265 = vmatpush1.msra.mxu0 0.0
        %266 = vmatprep.subr.mxu0 0.0
        %267 = vmatpush1.msra.mxu0 0.0
        %268 = vmatprep.subr.mxu0 0.0
        %269 = vmatpush1.msra.mxu0 0.0
        %270 = vmatprep.subr.mxu0 0.0
        %271 = vmatpush1.msra.mxu0 0.0
        %272 = vmatprep.subr.mxu0 0.0
        %273 = vmatpush1.msra.mxu0 0.0
        %274 = vmatprep.subr.mxu0 0.0
        %275 = vmatpush1.msra.mxu0 0.0
        %276 = vmatprep.subr.mxu0 0.0
        %277 = vmatpush1.msra.mxu0 0.0
        %278 = vmatprep.subr.mxu0 0.0
        %279 = vmatpush1.msra.mxu0 0.0
        %280 = vmatprep.subr.mxu0 0.0
        %281 = vmatpush1.msra.mxu0 0.0
        %282 = vmatprep.subr.mxu0 0.0
        %283 = vmatpush1.msra.mxu0 0.0
        %284 = vmatprep.subr.mxu0 0.0
        %285 = vmatpush1.msra.mxu0 0.0
        %286 = vmatprep.subr.mxu0 0.0
        %287 = vmatpush1.msra.mxu0 0.0
        %288 = vmatprep.subr.mxu0 0.0
        %289 = vmatpush1.msra.mxu0 0.0
        %290 = vmatprep.subr.mxu0 0.0
        %291 = vmatpush1.msra.mxu0 0.0
        %292 = vmatprep.subr.mxu0 0.0
        %293 = vmatpush1.msra.mxu0 0.0
        %294 = vmatprep.mubr.f32.mxu0 0.0
        %295 = vmatmul.mubr.f32.gmra.mrb[0].mxu0 %v213
        %v296 = vpop.f32.mrb[0].mxu0
        %v297 = vadd.f32 0.0, %v296
        %v298 = vpop.f32.mrb[0].mxu0
        %299 = vdwg.mxu0
        %v300 = vld [vmem:[#allocation7] sm:$0xff]
        %v301 = vadd.f32 %v297, %v300
        %302 = vst [vmem:[%s212] sm:$0xff] %v301
        %s303 = sand.u32 %s97, 1
        %s304 = scalar_lea.sflag [#allocation4], %s303
        %s305 = sand.u32 %s97, 1
        %s306 = smul.addr %s305, 8
        %s307 = scalar_lea.vmem [#allocation8], %s306
        // Predicated region
        $region45: #{tpu_custom_call.1} parent=31 // pred_check
          %p308 = pneg %p107
        $region46: #{tpu_custom_call.1} parent=31 // pred_check_branch
          %310 = sbr.rel (%p308) target = $region48
        $region47: #{tpu_custom_call.1} parent=31 // pred_region
          %s312 = ssub.s32 128, 128
          %313 = vsyncadd %s304, %s312
          %s314 = smul.addr %s21, 128
          %s315 = scalar_lea.hbm %s3, %s314
          %s317 = sshll.u32 %s307, 4
          %s318 = int_to_ptr.vmem [resolvable:$true] %s317
          %320 = dma.vmem_to_hbm [thread:$0]  %s318, 128, %s315, %s304
        $region48: #{tpu_custom_call.1} parent=31 // pred_fallthru
          _
      $region32: #{tpu_custom_call.1} parent=5 // pred_fallthru
        _
      %p321 = scmp.le.s32.totalorder 2, %s16
      // Predicated region
      $region49: #{tpu_custom_call.1} parent=5 // pred_check
        %p322 = pneg %p321
      $region50: #{tpu_custom_call.1} parent=5 // pred_check_branch
        %324 = sbr.rel (%p322) target = $region52
      $region51: #{tpu_custom_call.1} parent=5 // pred_region
        %s325 = ssub.s32 %s16, 2
        // Predicated region
        $region53: #{tpu_custom_call.1} parent=51 // pred_check
          %p326 = pneg %p113
        $region54: #{tpu_custom_call.1} parent=51 // pred_check_branch
          %328 = sbr.rel (%p326) target = $region56
        $region55: #{tpu_custom_call.1} parent=51 // pred_region
          %s329 = sand.u32 %s98, 1
          %s330 = scalar_lea.sflag [#allocation4], %s329
          %s331 = sand.u32 %s98, 1
          %s332 = smul.addr %s331, 8
          %s333 = scalar_lea.vmem [#allocation8], %s332
          %334 = dma.done %s330, 128
        $region56: #{tpu_custom_call.1} parent=51 // pred_fallthru
          _
      $region52: #{tpu_custom_call.1} parent=5 // pred_fallthru
        _
    $region6: #{tpu_custom_call.1} parent=1 // loop_footer
      %s20 = sadd.s32 1, %s16
    $region7: #{tpu_custom_call.1} parent=1 // loop_footer_branch
      %15 = sbr.rel target = $region3
    $region8: #{tpu_custom_call.1} parent=1 // loop_exit
      _
    %335 = vsyncpa [#allocation3], 1
    %s336 = scalar_lea.sflag [#allocation3], 1
    %337 = vsyncpa %s336, 1
    %338 = vsyncpa [#allocation6], 1
    %339 = vsyncpa [#allocation4], 1
    %s340 = scalar_lea.sflag [#allocation4], 1
    %341 = vsyncpa %s340, 1

</llo_original>
